<compile_context>
chip_gen: v6e
topology: v6e:2x2x1
jax: 0.10.0
libtpu: 0.0.40
codegen_flags: <defaults>
</compile_context>

<pallas_src>
import jax
import jax.numpy as jnp
from jax.experimental import pallas as pl
from jax.experimental.pallas import tpu as pltpu


def _round_up(n, m):
    return ((n + m - 1) // m) * m


def _cdiv(a, b):
    return -(-a // b)


def _mlp_stacked_kernel(x_ref, w1_ref, b1_ref, w2_ref, b2_ref, o_ref):
    # Feature-major tiles: x (D_in, block_b), out (D_out, block_b) — batch is
    # on the 128-lane axis, so loads/stores are lane-dense (unmasked vst).
    #   w1: (L, D_hid, D_in), b1: (L, D_hid, 1)
    #   w2: (L, D_out, D_hid), b2: (L, D_out, 1)
    act_dtype = x_ref.dtype
    x = x_ref[...]
    n_layers = w1_ref.shape[0]
    # Static Python loop -> fully unrolled at trace time; inter-layer
    # activations live entirely in vregs/VMEM (no HBM round-trip).
    for l in range(n_layers):
        h = jnp.dot(w1_ref[l], x, preferred_element_type=jnp.float32) + b1_ref[l]
        h = jnp.maximum(h, 0.0).astype(act_dtype)           # ReLU, bf16-stream safe
        x = (jnp.dot(w2_ref[l], h, preferred_element_type=jnp.float32)
             + b2_ref[l]).astype(act_dtype)
    o_ref[...] = x.astype(o_ref.dtype)


def mlp_stacked_forward(x, layer_params, *, block_b=32768, feature_major=False):
    """MLPStacked.forward: all n_layers MLPModules fused in one pallas_call.

    layer_params: list of (w1, b1, w2, b2) per layer, in PyTorch layout:
      w1 (D_hid, D_in), b1 (D_hid,), w2 (D_out, D_hid), b2 (D_out,).
    x: (B, D_in) batch-major (default, matching PyTorch), or (D_in, B) if
      feature_major=True (avoids the wrapper-side transpose HBM pass).
    """
    if feature_major:
        D_in, B = x.shape
        x_t = x
    else:
        B, D_in = x.shape
        # One extra HBM pass on a (B, 10) array; keep feature-major activations
        # upstream (feature_major=True) to avoid it in a larger model.
        x_t = x.T

    # Stack per-layer params on a leading n_layers axis (PyTorch (out,in) layout
    # is exactly what the feature-major matmul wants).
    w1 = jnp.stack([p[0] for p in layer_params])            # (L, D_hid, D_in)
    b1 = jnp.stack([p[1] for p in layer_params])[..., None]  # (L, D_hid, 1)
    w2 = jnp.stack([p[2] for p in layer_params])            # (L, D_out, D_hid)
    b2 = jnp.stack([p[3] for p in layer_params])[..., None]  # (L, D_out, 1)
    L, D_hid, _ = w1.shape
    D_out = w2.shape[1]

    # Lane-align the batch and split it into equal tiles: tail padding is
    # bounded by <128 rows no matter how large block_b is.
    B_lanes = _round_up(B, 128)
    blk = min(_round_up(block_b, 128), B_lanes)
    n_tiles = _cdiv(B_lanes, blk)
    blk = _round_up(_cdiv(B_lanes, n_tiles), 128)
    B_pad = n_tiles * blk
    if B_pad != B:
        x_t = jnp.pad(x_t, ((0, 0), (0, B_pad - B)))

    itemsize = jnp.dtype(x.dtype).itemsize
    param_bytes = sum(int(a.size) * a.dtype.itemsize for a in (w1, b1, w2, b2))
    act_bytes = B_pad * (D_in + D_out) * itemsize
    # VMEM budget: double-buffered x/out tiles + resident params + headroom.
    # Keep the request below v7x's 64 MiB physical VMEM (v5e/v6e have 128 MiB;
    # v5e's scoped default is only 16 MiB, so we always pass it explicitly).
    vmem_limit = 4 * blk * (D_in + D_out) * itemsize + 2 * param_bytes + (8 << 20)
    vmem_limit = int(max(16 << 20, min(vmem_limit, 60 << 20)))

    cost = pl.CostEstimate(
        flops=2 * B_pad * L * (D_in * D_hid + D_hid * D_out),
        transcendentals=0,
        bytes_accessed=act_bytes + param_bytes,
    )

    out_t = pl.pallas_call(
        _mlp_stacked_kernel,
        out_shape=jax.ShapeDtypeStruct((D_out, B_pad), x.dtype),
        grid=(n_tiles,),
        in_specs=[
            # Batch-tiled, lane-dense activation stream (double-buffered DMA).
            pl.BlockSpec((D_in, blk), lambda i: (0, i)),
            # Weights/biases: constant index_map -> loaded once, VMEM-resident.
            pl.BlockSpec((L, D_hid, D_in), lambda i: (0, 0, 0)),
            pl.BlockSpec((L, D_hid, 1), lambda i: (0, 0, 0)),
            pl.BlockSpec((L, D_out, D_hid), lambda i: (0, 0, 0)),
            pl.BlockSpec((L, D_out, 1), lambda i: (0, 0, 0)),
        ],
        out_specs=pl.BlockSpec((D_out, blk), lambda i: (0, i)),
        compiler_params=pltpu.CompilerParams(
            dimension_semantics=("parallel",),   # v7x 2-TC split over batch tiles
            vmem_limit_bytes=vmem_limit,
        ),
        cost_estimate=cost,
    )(x_t, w1, b1, w2, b2)

    out_t = out_t[:, :B]
    return out_t if feature_major else out_t.T


def init_mlp_module_params(key, d_in=10, d_hid=16, d_out=10, dtype=jnp.float32):
    """Deterministic init mimicking nn.Linear default (uniform +/- 1/sqrt(fan_in)).

    PyTorch-native layout: weight (out_features, in_features), bias (out_features,).
    """
    k1, k2, k3, k4 = jax.random.split(key, 4)
    bound1 = 1.0 / (d_in ** 0.5)
    bound2 = 1.0 / (d_hid ** 0.5)
    w1 = jax.random.uniform(k1, (d_hid, d_in), dtype, -bound1, bound1)
    b1 = jax.random.uniform(k2, (d_hid,), dtype, -bound1, bound1)
    w2 = jax.random.uniform(k3, (d_out, d_hid), dtype, -bound2, bound2)
    b2 = jax.random.uniform(k4, (d_out,), dtype, -bound2, bound2)
    return (w1, b1, w2, b2)


def mlp_stacked_reference(x, layer_params):
    """Pure-JAX reference for correctness checking (PyTorch semantics)."""
    for (w1, b1, w2, b2) in layer_params:
        x = jnp.maximum(x @ w1.T + b1, 0.0) @ w2.T + b2
    return x


if __name__ == "__main__":
    key = jax.random.PRNGKey(0)
    k_x, k_p0, k_p1 = jax.random.split(key, 3)

    batch = 8
    x = jax.random.normal(k_x, (batch, 10), jnp.float32)

    # n_layers = 2 MLPModules, deterministic parameters.
    layer_params = [
        init_mlp_module_params(k_p0),
        init_mlp_module_params(k_p1),
    ]

    # float32 path: must match the reference to tight tolerance.
    out = jax.block_until_ready(mlp_stacked_forward(x, layer_params))
    ref = mlp_stacked_reference(x, layer_params)
    assert out.shape == (batch, 10)
    assert jnp.allclose(out, ref, atol=1e-5, rtol=1e-5)

    # bf16 activation-stream path (bf16 HBM traffic, f32 MXU accumulation).
    x_bf = x.astype(jnp.bfloat16)
    params_bf = [tuple(p.astype(jnp.bfloat16) for p in lp) for lp in layer_params]
    out_bf = jax.block_until_ready(mlp_stacked_forward(x_bf, params_bf))
    ref_bf = mlp_stacked_reference(
        x_bf.astype(jnp.float32),
        [tuple(p.astype(jnp.float32) for p in lp) for lp in params_bf],
    )
    assert out_bf.shape == (batch, 10)
    assert jnp.allclose(out_bf.astype(jnp.float32), ref_bf, atol=5e-2, rtol=5e-2)

    print("KERNEL_OK")
</pallas_src>

<mosaic_0001>
module attributes {stable_mosaic.version = 11 : i64} {
  func.func @_mlp_stacked_kernel(%arg0: i32, %arg1: memref<10x128xf32, #tpu.memory_space<vmem>>, %arg2: memref<2x16x10xf32, #tpu.memory_space<vmem>>, %arg3: memref<2x16x1xf32, #tpu.memory_space<vmem>>, %arg4: memref<2x10x16xf32, #tpu.memory_space<vmem>>, %arg5: memref<2x10x1xf32, #tpu.memory_space<vmem>>, %arg6: memref<10x128xf32, #tpu.memory_space<vmem>>) attributes {dimension_semantics = [#tpu.dimension_semantics<parallel>], iteration_bounds = array<i64: 1>, scalar_prefetch = 0 : i64, scratch_operands = 0 : i64, tpu.core_type = #tpu.core_type<tc>, window_params = [{transform_indices = @transform_0, window_bounds = array<i64: 10, 128>}, {pipeline_mode = #tpu.pipeline_mode<synchronous>, transform_indices = @transform_1, window_bounds = array<i64: 2, 16, 10>}, {pipeline_mode = #tpu.pipeline_mode<synchronous>, transform_indices = @transform_2, window_bounds = array<i64: 2, 16, 1>}, {pipeline_mode = #tpu.pipeline_mode<synchronous>, transform_indices = @transform_3, window_bounds = array<i64: 2, 10, 16>}, {pipeline_mode = #tpu.pipeline_mode<synchronous>, transform_indices = @transform_4, window_bounds = array<i64: 2, 10, 1>}, {transform_indices = @transform_5, window_bounds = array<i64: 10, 128>}]} {
    %c0 = arith.constant 0 : index
    %c0_0 = arith.constant 0 : index
    %0 = vector.load %arg1[%c0, %c0_0] : memref<10x128xf32, #tpu.memory_space<vmem>>, vector<10x128xf32>
    %c0_1 = arith.constant 0 : index
    %c0_2 = arith.constant 0 : index
    %c0_3 = arith.constant 0 : index
    %1 = vector.load %arg2[%c0_1, %c0_2, %c0_3] : memref<2x16x10xf32, #tpu.memory_space<vmem>>, vector<1x16x10xf32>
    %2 = vector.shape_cast %1 : vector<1x16x10xf32> to vector<16x10xf32>
    %cst = arith.constant dense<0.000000e+00> : vector<16x128xf32>
    %3 = tpu.matmul %2, %0, %cst {dimension_numbers = #tpu.dot_dimension_numbers<[1], [0], [0], [1], [0, 0, 1, 1], [], []>} : vector<16x10xf32>, vector<10x128xf32>, vector<16x128xf32> -> vector<16x128xf32>
    %c0_4 = arith.constant 0 : index
    %c0_5 = arith.constant 0 : index
    %c0_6 = arith.constant 0 : index
    %4 = vector.load %arg3[%c0_4, %c0_5, %c0_6] : memref<2x16x1xf32, #tpu.memory_space<vmem>>, vector<1x16x1xf32>
    %5 = vector.shape_cast %4 : vector<1x16x1xf32> to vector<16x1xf32>
    %6 = vector.broadcast %5 : vector<16x1xf32> to vector<16x128xf32>
    %7 = arith.addf %3, %6 : vector<16x128xf32>
    %cst_7 = arith.constant 0.000000e+00 : f32
    %8 = vector.broadcast %cst_7 : f32 to vector<16x128xf32>
    %9 = arith.maximumf %7, %8 : vector<16x128xf32>
    %c0_8 = arith.constant 0 : index
    %c0_9 = arith.constant 0 : index
    %c0_10 = arith.constant 0 : index
    %10 = vector.load %arg4[%c0_8, %c0_9, %c0_10] : memref<2x10x16xf32, #tpu.memory_space<vmem>>, vector<1x10x16xf32>
    %11 = vector.shape_cast %10 : vector<1x10x16xf32> to vector<10x16xf32>
    %cst_11 = arith.constant dense<0.000000e+00> : vector<10x128xf32>
    %12 = tpu.matmul %11, %9, %cst_11 {dimension_numbers = #tpu.dot_dimension_numbers<[1], [0], [0], [1], [0, 0, 1, 1], [], []>} : vector<10x16xf32>, vector<16x128xf32>, vector<10x128xf32> -> vector<10x128xf32>
    %c0_12 = arith.constant 0 : index
    %c0_13 = arith.constant 0 : index
    %c0_14 = arith.constant 0 : index
    %13 = vector.load %arg5[%c0_12, %c0_13, %c0_14] : memref<2x10x1xf32, #tpu.memory_space<vmem>>, vector<1x10x1xf32>
    %14 = vector.shape_cast %13 : vector<1x10x1xf32> to vector<10x1xf32>
    %15 = vector.broadcast %14 : vector<10x1xf32> to vector<10x128xf32>
    %16 = arith.addf %12, %15 : vector<10x128xf32>
    %c1 = arith.constant 1 : index
    %c0_15 = arith.constant 0 : index
    %c0_16 = arith.constant 0 : index
    %17 = vector.load %arg2[%c1, %c0_15, %c0_16] : memref<2x16x10xf32, #tpu.memory_space<vmem>>, vector<1x16x10xf32>
    %18 = vector.shape_cast %17 : vector<1x16x10xf32> to vector<16x10xf32>
    %cst_17 = arith.constant dense<0.000000e+00> : vector<16x128xf32>
    %19 = tpu.matmul %18, %16, %cst_17 {dimension_numbers = #tpu.dot_dimension_numbers<[1], [0], [0], [1], [0, 0, 1, 1], [], []>} : vector<16x10xf32>, vector<10x128xf32>, vector<16x128xf32> -> vector<16x128xf32>
    %c1_18 = arith.constant 1 : index
    %c0_19 = arith.constant 0 : index
    %c0_20 = arith.constant 0 : index
    %20 = vector.load %arg3[%c1_18, %c0_19, %c0_20] : memref<2x16x1xf32, #tpu.memory_space<vmem>>, vector<1x16x1xf32>
    %21 = vector.shape_cast %20 : vector<1x16x1xf32> to vector<16x1xf32>
    %22 = vector.broadcast %21 : vector<16x1xf32> to vector<16x128xf32>
    %23 = arith.addf %19, %22 : vector<16x128xf32>
    %cst_21 = arith.constant 0.000000e+00 : f32
    %24 = vector.broadcast %cst_21 : f32 to vector<16x128xf32>
    %25 = arith.maximumf %23, %24 : vector<16x128xf32>
    %c1_22 = arith.constant 1 : index
    %c0_23 = arith.constant 0 : index
    %c0_24 = arith.constant 0 : index
    %26 = vector.load %arg4[%c1_22, %c0_23, %c0_24] : memref<2x10x16xf32, #tpu.memory_space<vmem>>, vector<1x10x16xf32>
    %27 = vector.shape_cast %26 : vector<1x10x16xf32> to vector<10x16xf32>
    %cst_25 = arith.constant dense<0.000000e+00> : vector<10x128xf32>
    %28 = tpu.matmul %27, %25, %cst_25 {dimension_numbers = #tpu.dot_dimension_numbers<[1], [0], [0], [1], [0, 0, 1, 1], [], []>} : vector<10x16xf32>, vector<16x128xf32>, vector<10x128xf32> -> vector<10x128xf32>
    %c1_26 = arith.constant 1 : index
    %c0_27 = arith.constant 0 : index
    %c0_28 = arith.constant 0 : index
    %29 = vector.load %arg5[%c1_26, %c0_27, %c0_28] : memref<2x10x1xf32, #tpu.memory_space<vmem>>, vector<1x10x1xf32>
    %30 = vector.shape_cast %29 : vector<1x10x1xf32> to vector<10x1xf32>
    %31 = vector.broadcast %30 : vector<10x1xf32> to vector<10x128xf32>
    %32 = arith.addf %28, %31 : vector<10x128xf32>
    %c0_29 = arith.constant 0 : index
    %c0_30 = arith.constant 0 : index
    %33 = vector.load %arg6[%c0_29, %c0_30] : memref<10x128xf32, #tpu.memory_space<vmem>>, vector<10x128xf32>
    tpu.vector_store %arg6[%c0_29, %c0_30], %32 {strides = array<i32>} : memref<10x128xf32, #tpu.memory_space<vmem>>, vector<10x128xf32>,
    return
  }
  func.func @transform_0(%arg0: i32) -> (i32, i32) {
    %c0_i32 = arith.constant 0 : i32
    %c0_i32_0 = arith.constant 0 : i32
    return %c0_i32, %arg0 : i32, i32
  }
  func.func @transform_1(%arg0: i32) -> (i32, i32, i32) {
    %c0_i32 = arith.constant 0 : i32
    %c0_i32_0 = arith.constant 0 : i32
    %c0_i32_1 = arith.constant 0 : i32
    %c0_i32_2 = arith.constant 0 : i32
    return %c0_i32, %c0_i32_0, %c0_i32_1 : i32, i32, i32
  }
  func.func @transform_2(%arg0: i32) -> (i32, i32, i32) {
    %c0_i32 = arith.constant 0 : i32
    %c0_i32_0 = arith.constant 0 : i32
    %c0_i32_1 = arith.constant 0 : i32
    %c0_i32_2 = arith.constant 0 : i32
    return %c0_i32, %c0_i32_0, %c0_i32_1 : i32, i32, i32
  }
  func.func @transform_3(%arg0: i32) -> (i32, i32, i32) {
    %c0_i32 = arith.constant 0 : i32
    %c0_i32_0 = arith.constant 0 : i32
    %c0_i32_1 = arith.constant 0 : i32
    %c0_i32_2 = arith.constant 0 : i32
    return %c0_i32, %c0_i32_0, %c0_i32_1 : i32, i32, i32
  }
  func.func @transform_4(%arg0: i32) -> (i32, i32, i32) {
    %c0_i32 = arith.constant 0 : i32
    %c0_i32_0 = arith.constant 0 : i32
    %c0_i32_1 = arith.constant 0 : i32
    %c0_i32_2 = arith.constant 0 : i32
    return %c0_i32, %c0_i32_0, %c0_i32_1 : i32, i32, i32
  }
  func.func @transform_5(%arg0: i32) -> (i32, i32) {
    %c0_i32 = arith.constant 0 : i32
    %c0_i32_0 = arith.constant 0 : i32
    return %c0_i32, %arg0 : i32, i32
  }
}

</mosaic_0001>

<llo_original>
// kernel: tpu_custom_call.1
$region0: #{tpu_custom_call.1}
  #allocation0 [shape = 'u32[]', space=smem, size = 0x4, offset = 0x4, fixed_abs, tag = 'smem constant byte address 0x4 - core index']
  #allocation1 [shape = 'u32[144,128]{1,0:T(1,128)}', space=vmem, size = 0x12000, scoped, tag = 'internal scratch']
  %s0 = inlined_call_operand.vmem [shape: f32[10,128], index: 0, kind: input, shape index: {}]
  %s1 = inlined_call_operand.vmem [shape: f32[2,16,10], index: 1, kind: input, shape index: {}]
  %s2 = inlined_call_operand.vmem [shape: f32[2,16,1], index: 2, kind: input, shape index: {}]
  %s3 = inlined_call_operand.vmem [shape: f32[2,10,16], index: 3, kind: input, shape index: {}]
  %s4 = inlined_call_operand.vmem [shape: f32[2,10,1], index: 4, kind: input, shape index: {}]
  %s5 = inlined_call_operand.hbm [shape: f32[10,128], index: 5, kind: output, shape index: {}]
  %s6 = sld [smem:[#allocation0]]
  $region30: #{tpu_custom_call.1} parent=0
    _
  %s8 = ssub.s32 1, %s6
  %s9 = scalar_select 0, %s8, %s6
  $region1: #{tpu_custom_call.1} parent=0
    #allocation2 [shape = 'u8[8192]{0}', space=vmem, size = 0x2000, scoped, tag = 'output window, operand 0, single buffered']
    #allocation3 [shape = 's32[1]{0}', space=sflag, size = 0x4, scoped, tag = 'scoped memory for tpu_custom_call.1']
    %10 = vsyncpa [#allocation3], 0
    // Predicated region
    $region2: #{tpu_custom_call.1} parent=1 // pred_check
      _
    $region3: #{tpu_custom_call.1} parent=1 // pred_check_branch
      %12 = sbr.rel (0) target = $region5
    $region4: #{tpu_custom_call.1} parent=1 // pred_region
      _
    $region5: #{tpu_custom_call.1} parent=1 // pred_fallthru
      _
    // Predicated region
    $region6: #{tpu_custom_call.1} parent=1 // pred_check
      _
    $region7: #{tpu_custom_call.1} parent=1 // pred_check_branch
      %14 = sbr.rel (0) target = $region9
    $region8: #{tpu_custom_call.1} parent=1 // pred_region
      _
    $region9: #{tpu_custom_call.1} parent=1 // pred_fallthru
      _
    // Predicated region
    $region10: #{tpu_custom_call.1} parent=1 // pred_check
      _
    $region11: #{tpu_custom_call.1} parent=1 // pred_check_branch
      %16 = sbr.rel (0) target = $region13
    $region12: #{tpu_custom_call.1} parent=1 // pred_region
      _
    $region13: #{tpu_custom_call.1} parent=1 // pred_fallthru
      _
    // Predicated region
    $region14: #{tpu_custom_call.1} parent=1 // pred_check
      _
    $region15: #{tpu_custom_call.1} parent=1 // pred_check_branch
      %18 = sbr.rel (0) target = $region17
    $region16: #{tpu_custom_call.1} parent=1 // pred_region
      _
    $region17: #{tpu_custom_call.1} parent=1 // pred_fallthru
      _
    // Predicated region
    $region18: #{tpu_custom_call.1} parent=1 // pred_check
      _
    $region19: #{tpu_custom_call.1} parent=1 // pred_check_branch
      %20 = sbr.rel (0) target = $region21
    $region20: #{tpu_custom_call.1} parent=1 // pred_region
      _
    $region21: #{tpu_custom_call.1} parent=1 // pred_fallthru
      _
    %v21 = vld [vmem:[%s0] sm:$0xff]
    %v22 = vld [vmem:[%s0 + $0x8] sm:$0x3]
    %v23 = vld [vmem:[%s1] sm:$0xff]
    %v24 = vld [vmem:[%s1 + $0x8] sm:$0xff]
    %v25 = vld [vmem:[%s2] sm:$0xff]
    %v26 = vld [vmem:[%s2 + $0x8] sm:$0xff]
    %28 = vset.pattern.permute.xlu0 0
    %29 = vperm.xlu0 %28, %v25
    %v30 = vpop.permute.xlu0 %29
    %33 = vset.pattern.permute.xlu0 0
    %34 = vperm.xlu0 %33, %v26
    %v35 = vpop.permute.xlu0 %34
    %vm37 = vcmask 80896
    %v39 = vsel %vm37, %v23, 0
    %v42 = vsel %vm37, %v24, 0
    %vm44 = vcmask 1041408
    %v46 = vsel %vm44, %v22, 0
    %48 = vmatprep.subr.mxu0 0.0
    %49 = vmatpush1.msra.mxu0 0.0
    %50 = vmatprep.subr.mxu0 0.0
    %51 = vmatpush1.msra.mxu0 0.0
    %52 = vmatprep.subr.mxu0 0.0
    %53 = vmatpush1.msra.mxu0 0.0
    %54 = vmatprep.subr.mxu0 0.0
    %55 = vmatpush1.msra.mxu0 0.0
    %56 = vmatprep.subr.mxu0 0.0
    %57 = vmatpush1.msra.mxu0 0.0
    %58 = vmatprep.subr.mxu0 0.0
    %59 = vmatpush1.msra.mxu0 0.0
    %60 = vmatprep.subr.mxu0 0.0
    %61 = vmatpush1.msra.mxu0 0.0
    %62 = vmatprep.subr.mxu0 0.0
    %63 = vmatpush1.msra.mxu0 0.0
    %64 = vmatprep.subr.mxu0 0.0
    %65 = vmatpush1.msra.mxu0 0.0
    %66 = vmatprep.subr.mxu0 0.0
    %67 = vmatpush1.msra.mxu0 0.0
    %68 = vmatprep.subr.mxu0 0.0
    %69 = vmatpush1.msra.mxu0 0.0
    %70 = vmatprep.subr.mxu0 0.0
    %71 = vmatpush1.msra.mxu0 0.0
    %72 = vmatprep.subr.mxu0 0.0
    %73 = vmatpush1.msra.mxu0 0.0
    %74 = vmatprep.subr.mxu0 0.0
    %75 = vmatpush1.msra.mxu0 0.0
    %76 = vmatprep.subr.mxu0 0.0
    %77 = vmatpush1.msra.mxu0 %v46
    %78 = vmatprep.subr.mxu0 0.0
    %79 = vmatpush1.msra.mxu0 %v21
    %80 = vmatprep.subr.mxu0 0.0
    %81 = vmatpush2.msra.mxu0 0.0
    %82 = vmatprep.subr.mxu0 0.0
    %83 = vmatpush2.msra.mxu0 0.0
    %84 = vmatprep.subr.mxu0 0.0
    %85 = vmatpush2.msra.mxu0 0.0
    %86 = vmatprep.subr.mxu0 0.0
    %87 = vmatpush2.msra.mxu0 0.0
    %88 = vmatprep.subr.mxu0 0.0
    %89 = vmatpush2.msra.mxu0 0.0
    %90 = vmatprep.subr.mxu0 0.0
    %91 = vmatpush2.msra.mxu0 0.0
    %92 = vmatprep.subr.mxu0 0.0
    %93 = vmatpush2.msra.mxu0 0.0
    %94 = vmatprep.subr.mxu0 0.0
    %95 = vmatpush2.msra.mxu0 0.0
    %96 = vmatprep.subr.mxu0 0.0
    %97 = vmatpush2.msra.mxu0 0.0
    %98 = vmatprep.subr.mxu0 0.0
    %99 = vmatpush2.msra.mxu0 0.0
    %100 = vmatprep.subr.mxu0 0.0
    %101 = vmatpush2.msra.mxu0 0.0
    %102 = vmatprep.subr.mxu0 0.0
    %103 = vmatpush2.msra.mxu0 0.0
    %104 = vmatprep.subr.mxu0 0.0
    %105 = vmatpush2.msra.mxu0 0.0
    %106 = vmatprep.subr.mxu0 0.0
    %107 = vmatpush2.msra.mxu0 0.0
    %108 = vmatprep.subr.mxu0 0.0
    %109 = vmatpush2.msra.mxu0 0.0
    %110 = vmatprep.subr.mxu0 0.0
    %111 = vmatpush2.msra.mxu0 0.0
    %112 = vmatprep.mubr.f32.mxu0 0.0
    %113 = vmatmul.mubr.f32.gmra.mxu0 %v39
    %v114 = vpop.f32.mrf.mxu0
    %v115 = vadd.f32 %v30, %v114
    %v116 = vpop.f32.mrf.mxu0
    %117 = vmatprep.mubr.f32.mxu0 0.0
    %118 = vmatmul.mubr.f32.gmra.mxu0 %v42
    %v119 = vpop.f32.mrf.mxu0
    %v120 = vadd.f32 %v35, %v119
    %v121 = vpop.f32.mrf.mxu0
    %122 = vdwg.mxu0
    %v123 = vmax.f32 %v115, 0.0
    %v124 = vmax.f32 %v120, 0.0
    %v125 = vld [vmem:[%s3] sm:$0xff]
    %v126 = vld [vmem:[%s3 + $0x8] sm:$0x3]
    %v127 = vld [vmem:[%s4] sm:$0xff]
    %v128 = vld [vmem:[%s4 + $0x8] sm:$0x3]
    %130 = vset.pattern.permute.xlu0 0
    %131 = vperm.xlu0 %130, %v127
    %v132 = vpop.permute.xlu0 %131
    %135 = vset.pattern.permute.xlu0 0
    %136 = vperm.xlu0 %135, %v128
    %v137 = vpop.permute.xlu0 %136
    %vm139 = vcmask 130048
    %v141 = vsel %vm139, %v125, 0
    %v144 = vsel %vm139, %v126, 0
    %146 = vmatprep.subr.mxu0 0.0
    %147 = vmatpush1.msra.mxu0 0.0
    %148 = vmatprep.subr.mxu0 0.0
    %149 = vmatpush1.msra.mxu0 0.0
    %150 = vmatprep.subr.mxu0 0.0
    %151 = vmatpush1.msra.mxu0 0.0
    %152 = vmatprep.subr.mxu0 0.0
    %153 = vmatpush1.msra.mxu0 0.0
    %154 = vmatprep.subr.mxu0 0.0
    %155 = vmatpush1.msra.mxu0 0.0
    %156 = vmatprep.subr.mxu0 0.0
    %157 = vmatpush1.msra.mxu0 0.0
    %158 = vmatprep.subr.mxu0 0.0
    %159 = vmatpush1.msra.mxu0 0.0
    %160 = vmatprep.subr.mxu0 0.0
    %161 = vmatpush1.msra.mxu0 0.0
    %162 = vmatprep.subr.mxu0 0.0
    %163 = vmatpush1.msra.mxu0 0.0
    %164 = vmatprep.subr.mxu0 0.0
    %165 = vmatpush1.msra.mxu0 0.0
    %166 = vmatprep.subr.mxu0 0.0
    %167 = vmatpush1.msra.mxu0 0.0
    %168 = vmatprep.subr.mxu0 0.0
    %169 = vmatpush1.msra.mxu0 0.0
    %170 = vmatprep.subr.mxu0 0.0
    %171 = vmatpush1.msra.mxu0 0.0
    %172 = vmatprep.subr.mxu0 0.0
    %173 = vmatpush1.msra.mxu0 0.0
    %174 = vmatprep.subr.mxu0 0.0
    %175 = vmatpush1.msra.mxu0 %v124
    %176 = vmatprep.subr.mxu0 0.0
    %177 = vmatpush1.msra.mxu0 %v123
    %178 = vmatprep.subr.mxu0 0.0
    %179 = vmatpush2.msra.mxu0 0.0
    %180 = vmatprep.subr.mxu0 0.0
    %181 = vmatpush2.msra.mxu0 0.0
    %182 = vmatprep.subr.mxu0 0.0
    %183 = vmatpush2.msra.mxu0 0.0
    %184 = vmatprep.subr.mxu0 0.0
    %185 = vmatpush2.msra.mxu0 0.0
    %186 = vmatprep.subr.mxu0 0.0
    %187 = vmatpush2.msra.mxu0 0.0
    %188 = vmatprep.subr.mxu0 0.0
    %189 = vmatpush2.msra.mxu0 0.0
    %190 = vmatprep.subr.mxu0 0.0
    %191 = vmatpush2.msra.mxu0 0.0
    %192 = vmatprep.subr.mxu0 0.0
    %193 = vmatpush2.msra.mxu0 0.0
    %194 = vmatprep.subr.mxu0 0.0
    %195 = vmatpush2.msra.mxu0 0.0
    %196 = vmatprep.subr.mxu0 0.0
    %197 = vmatpush2.msra.mxu0 0.0
    %198 = vmatprep.subr.mxu0 0.0
    %199 = vmatpush2.msra.mxu0 0.0
    %200 = vmatprep.subr.mxu0 0.0
    %201 = vmatpush2.msra.mxu0 0.0
    %202 = vmatprep.subr.mxu0 0.0
    %203 = vmatpush2.msra.mxu0 0.0
    %204 = vmatprep.subr.mxu0 0.0
    %205 = vmatpush2.msra.mxu0 0.0
    %206 = vmatprep.subr.mxu0 0.0
    %207 = vmatpush2.msra.mxu0 0.0
    %208 = vmatprep.subr.mxu0 0.0
    %209 = vmatpush2.msra.mxu0 0.0
    %210 = vmatprep.mubr.f32.mxu0 0.0
    %211 = vmatmul.mubr.f32.gmra.mxu0 %v141
    %v212 = vpop.f32.mrf.mxu0
    %v213 = vadd.f32 %v132, %v212
    %v214 = vpop.f32.mrf.mxu0
    %215 = vmatprep.mubr.f32.mxu0 0.0
    %216 = vmatmul.mubr.f32.gmra.mxu0 %v144
    %v217 = vpop.f32.mrf.mxu0
    %v218 = vadd.f32 %v137, %v217
    %v219 = vpop.f32.mrf.mxu0
    %220 = vdwg.mxu0
    %s221 = scalar_lea.vmem %s1, 16
    %v222 = vld [vmem:[%s221] sm:$0xff]
    %v223 = vld [vmem:[%s221 + $0x8] sm:$0xff]
    %s224 = scalar_lea.vmem %s2, 16
    %v225 = vld [vmem:[%s224] sm:$0xff]
    %v226 = vld [vmem:[%s224 + $0x8] sm:$0xff]
    %228 = vset.pattern.permute.xlu0 0
    %229 = vperm.xlu0 %228, %v225
    %v230 = vpop.permute.xlu0 %229
    %233 = vset.pattern.permute.xlu0 0
    %234 = vperm.xlu0 %233, %v226
    %v235 = vpop.permute.xlu0 %234
    %v238 = vsel %vm37, %v222, 0
    %v241 = vsel %vm37, %v223, 0
    %v244 = vsel %vm44, %v218, 0
    %246 = vmatprep.subr.mxu0 0.0
    %247 = vmatpush1.msra.mxu0 0.0
    %248 = vmatprep.subr.mxu0 0.0
    %249 = vmatpush1.msra.mxu0 0.0
    %250 = vmatprep.subr.mxu0 0.0
    %251 = vmatpush1.msra.mxu0 0.0
    %252 = vmatprep.subr.mxu0 0.0
    %253 = vmatpush1.msra.mxu0 0.0
    %254 = vmatprep.subr.mxu0 0.0
    %255 = vmatpush1.msra.mxu0 0.0
    %256 = vmatprep.subr.mxu0 0.0
    %257 = vmatpush1.msra.mxu0 0.0
    %258 = vmatprep.subr.mxu0 0.0
    %259 = vmatpush1.msra.mxu0 0.0
    %260 = vmatprep.subr.mxu0 0.0
    %261 = vmatpush1.msra.mxu0 0.0
    %262 = vmatprep.subr.mxu0 0.0
    %263 = vmatpush1.msra.mxu0 0.0
    %264 = vmatprep.subr.mxu0 0.0
    %265 = vmatpush1.msra.mxu0 0.0
    %266 = vmatprep.subr.mxu0 0.0
    %267 = vmatpush1.msra.mxu0 0.0
    %268 = vmatprep.subr.mxu0 0.0
    %269 = vmatpush1.msra.mxu0 0.0
    %270 = vmatprep.subr.mxu0 0.0
    %271 = vmatpush1.msra.mxu0 0.0
    %272 = vmatprep.subr.mxu0 0.0
    %273 = vmatpush1.msra.mxu0 0.0
    %274 = vmatprep.subr.mxu0 0.0
    %275 = vmatpush1.msra.mxu0 %v244
    %276 = vmatprep.subr.mxu0 0.0
    %277 = vmatpush1.msra.mxu0 %v213
    %278 = vmatprep.subr.mxu0 0.0
    %279 = vmatpush2.msra.mxu0 0.0
    %280 = vmatprep.subr.mxu0 0.0
    %281 = vmatpush2.msra.mxu0 0.0
    %282 = vmatprep.subr.mxu0 0.0
    %283 = vmatpush2.msra.mxu0 0.0
    %284 = vmatprep.subr.mxu0 0.0
    %285 = vmatpush2.msra.mxu0 0.0
    %286 = vmatprep.subr.mxu0 0.0
    %287 = vmatpush2.msra.mxu0 0.0
    %288 = vmatprep.subr.mxu0 0.0
    %289 = vmatpush2.msra.mxu0 0.0
    %290 = vmatprep.subr.mxu0 0.0
    %291 = vmatpush2.msra.mxu0 0.0
    %292 = vmatprep.subr.mxu0 0.0
    %293 = vmatpush2.msra.mxu0 0.0
    %294 = vmatprep.subr.mxu0 0.0
    %295 = vmatpush2.msra.mxu0 0.0
    %296 = vmatprep.subr.mxu0 0.0
    %297 = vmatpush2.msra.mxu0 0.0
    %298 = vmatprep.subr.mxu0 0.0
    %299 = vmatpush2.msra.mxu0 0.0
    %300 = vmatprep.subr.mxu0 0.0
    %301 = vmatpush2.msra.mxu0 0.0
    %302 = vmatprep.subr.mxu0 0.0
    %303 = vmatpush2.msra.mxu0 0.0
    %304 = vmatprep.subr.mxu0 0.0
    %305 = vmatpush2.msra.mxu0 0.0
    %306 = vmatprep.subr.mxu0 0.0
    %307 = vmatpush2.msra.mxu0 0.0
    %308 = vmatprep.subr.mxu0 0.0
    %309 = vmatpush2.msra.mxu0 0.0
    %310 = vmatprep.mubr.f32.mxu0 0.0
    %311 = vmatmul.mubr.f32.gmra.mxu0 %v238
    %v312 = vpop.f32.mrf.mxu0
    %v313 = vadd.f32 %v230, %v312
    %v314 = vpop.f32.mrf.mxu0
    %315 = vmatprep.mubr.f32.mxu0 0.0
    %316 = vmatmul.mubr.f32.gmra.mxu0 %v241
    %v317 = vpop.f32.mrf.mxu0
    %v318 = vadd.f32 %v235, %v317
    %v319 = vpop.f32.mrf.mxu0
    %320 = vdwg.mxu0
    %v321 = vmax.f32 %v313, 0.0
    %v322 = vmax.f32 %v318, 0.0
    %s323 = scalar_lea.vmem %s3, 16
    %v324 = vld [vmem:[%s323] sm:$0xff]
    %v325 = vld [vmem:[%s323 + $0x8] sm:$0x3]
    %s326 = scalar_lea.vmem %s4, 16
    %v327 = vld [vmem:[%s326] sm:$0xff]
    %v328 = vld [vmem:[%s326 + $0x8] sm:$0x3]
    %330 = vset.pattern.permute.xlu0 0
    %331 = vperm.xlu0 %330, %v327
    %v332 = vpop.permute.xlu0 %331
    %335 = vset.pattern.permute.xlu0 0
    %336 = vperm.xlu0 %335, %v328
    %v337 = vpop.permute.xlu0 %336
    %v340 = vsel %vm139, %v324, 0
    %v343 = vsel %vm139, %v325, 0
    %345 = vmatprep.subr.mxu0 0.0
    %346 = vmatpush1.msra.mxu0 0.0
    %347 = vmatprep.subr.mxu0 0.0
    %348 = vmatpush1.msra.mxu0 0.0
    %349 = vmatprep.subr.mxu0 0.0
    %350 = vmatpush1.msra.mxu0 0.0
    %351 = vmatprep.subr.mxu0 0.0
    %352 = vmatpush1.msra.mxu0 0.0
    %353 = vmatprep.subr.mxu0 0.0
    %354 = vmatpush1.msra.mxu0 0.0
    %355 = vmatprep.subr.mxu0 0.0
    %356 = vmatpush1.msra.mxu0 0.0
    %357 = vmatprep.subr.mxu0 0.0
    %358 = vmatpush1.msra.mxu0 0.0
    %359 = vmatprep.subr.mxu0 0.0
    %360 = vmatpush1.msra.mxu0 0.0
    %361 = vmatprep.subr.mxu0 0.0
    %362 = vmatpush1.msra.mxu0 0.0
    %363 = vmatprep.subr.mxu0 0.0
    %364 = vmatpush1.msra.mxu0 0.0
    %365 = vmatprep.subr.mxu0 0.0
    %366 = vmatpush1.msra.mxu0 0.0
    %367 = vmatprep.subr.mxu0 0.0
    %368 = vmatpush1.msra.mxu0 0.0
    %369 = vmatprep.subr.mxu0 0.0
    %370 = vmatpush1.msra.mxu0 0.0
    %371 = vmatprep.subr.mxu0 0.0
    %372 = vmatpush1.msra.mxu0 0.0
    %373 = vmatprep.subr.mxu0 0.0
    %374 = vmatpush1.msra.mxu0 %v322
    %375 = vmatprep.subr.mxu0 0.0
    %376 = vmatpush1.msra.mxu0 %v321
    %377 = vmatprep.subr.mxu0 0.0
    %378 = vmatpush2.msra.mxu0 0.0
    %379 = vmatprep.subr.mxu0 0.0
    %380 = vmatpush2.msra.mxu0 0.0
    %381 = vmatprep.subr.mxu0 0.0
    %382 = vmatpush2.msra.mxu0 0.0
    %383 = vmatprep.subr.mxu0 0.0
    %384 = vmatpush2.msra.mxu0 0.0
    %385 = vmatprep.subr.mxu0 0.0
    %386 = vmatpush2.msra.mxu0 0.0
    %387 = vmatprep.subr.mxu0 0.0
    %388 = vmatpush2.msra.mxu0 0.0
    %389 = vmatprep.subr.mxu0 0.0
    %390 = vmatpush2.msra.mxu0 0.0
    %391 = vmatprep.subr.mxu0 0.0
    %392 = vmatpush2.msra.mxu0 0.0
    %393 = vmatprep.subr.mxu0 0.0
    %394 = vmatpush2.msra.mxu0 0.0
    %395 = vmatprep.subr.mxu0 0.0
    %396 = vmatpush2.msra.mxu0 0.0
    %397 = vmatprep.subr.mxu0 0.0
    %398 = vmatpush2.msra.mxu0 0.0
    %399 = vmatprep.subr.mxu0 0.0
    %400 = vmatpush2.msra.mxu0 0.0
    %401 = vmatprep.subr.mxu0 0.0
    %402 = vmatpush2.msra.mxu0 0.0
    %403 = vmatprep.subr.mxu0 0.0
    %404 = vmatpush2.msra.mxu0 0.0
    %405 = vmatprep.subr.mxu0 0.0
    %406 = vmatpush2.msra.mxu0 0.0
    %407 = vmatprep.subr.mxu0 0.0
    %408 = vmatpush2.msra.mxu0 0.0
    %409 = vmatprep.mubr.f32.mxu0 0.0
    %410 = vmatmul.mubr.f32.gmra.mxu0 %v340
    %v411 = vpop.f32.mrf.mxu0
    %v412 = vadd.f32 %v332, %v411
    %v413 = vpop.f32.mrf.mxu0
    %414 = vmatprep.mubr.f32.mxu0 0.0
    %415 = vmatmul.mubr.f32.gmra.mxu0 %v343
    %v416 = vpop.f32.mrf.mxu0
    %v417 = vadd.f32 %v337, %v416
    %v418 = vpop.f32.mrf.mxu0
    %419 = vdwg.mxu0
    %420 = vst [vmem:[#allocation2] sm:$0xff] %v412
    %421 = vst [vmem:[#allocation2 + $0x8] sm:$0x3] %v417
    // Predicated region
    $region22: #{tpu_custom_call.1} parent=1 // pred_check
      _
    $region23: #{tpu_custom_call.1} parent=1 // pred_check_branch
      %423 = sbr.rel (0) target = $region25
    $region24: #{tpu_custom_call.1} parent=1 // pred_region
      %s425 = ssub.s32 256, 256
      %426 = vsyncadd [#allocation3], %s425
      %s427 = sshll.u32 [#allocation2], 4
      %s428 = int_to_ptr.vmem [resolvable:$true] %s427
      %433 = dma.vmem_to_hbm [thread:$0]  %s428, 256, %s5, [#allocation3], 128, 128, 8
    $region25: #{tpu_custom_call.1} parent=1 // pred_fallthru
      _
    // Predicated region
    $region26: #{tpu_custom_call.1} parent=1 // pred_check
      _
    $region27: #{tpu_custom_call.1} parent=1 // pred_check_branch
      %435 = sbr.rel (0) target = $region29
    $region28: #{tpu_custom_call.1} parent=1 // pred_region
      %436 = dma.done [#allocation3], 256
    $region29: #{tpu_custom_call.1} parent=1 // pred_fallthru
      _
    %437 = vsyncpa [#allocation3], 1

</llo_original>
